<compile_context>
chip_gen: v7x
topology: tpu7x:2x2x1
jax: 0.10.0
libtpu: 0.0.40
codegen_flags: <defaults>
</compile_context>

<pallas_src>
import jax
import jax.numpy as jnp
from jax.experimental import pallas as pl
from jax.experimental.pallas import tpu as pltpu

LANES = 128
SUBLANES = 8
# 4096 rows x 128 lanes x 4 B = 2 MiB per input per pipeline buffer; inputs are
# double-buffered -> ~8 MiB VMEM, safe on v5e's 16 MiB default scoped VMEM and
# comfortably within v6e/v7x budgets (review: 4096-8192 on v6e/v7x, <=4096 v5e).
MAX_ROW_BLOCK = 4096


def _round_up(x, m):
    return (x + m - 1) // m * m


def _make_pair_kernel(total_rows, row_block):
    """sum(|a - b|) for one pair, streamed in (row_block, 128) tiles.

    The (8, 128) output tile is a carried accumulator (same block index every
    grid step) holding per-lane f32 partial sums; rows past the true end of the
    tensor in the last partial tile are masked out (their buffer contents are
    unspecified)."""
    ragged = total_rows % row_block != 0

    def kernel(a_ref, b_ref, o_ref):
        i = pl.program_id(0)

        @pl.when(i == 0)
        def _():
            o_ref[...] = jnp.zeros_like(o_ref)

        d = jnp.abs(a_ref[...].astype(jnp.float32) - b_ref[...].astype(jnp.float32))

        if ragged:
            row = i * row_block + jax.lax.broadcasted_iota(jnp.int32, d.shape, 0)
            d = jnp.where(row < total_rows, d, 0.0)

        # Per-lane partial sums (1, 128), broadcast-added across the 8 sublanes
        # of the resident output tile (all 8 rows end up identical).
        o_ref[...] += jnp.sum(d, axis=0, keepdims=True)

    return kernel


def _pair_abs_sum(a2d, b2d):
    """Per-lane f32 sums of |a2d - b2d| for one (rows, 128) pair, reduced in glue."""
    rows = a2d.shape[0]
    row_block = min(MAX_ROW_BLOCK, _round_up(rows, SUBLANES))
    nblk = pl.cdiv(rows, row_block)

    out = pl.pallas_call(
        _make_pair_kernel(rows, row_block),
        out_shape=jax.ShapeDtypeStruct((SUBLANES, LANES), jnp.float32),
        grid=(nblk,),
        in_specs=[
            pl.BlockSpec((row_block, LANES), lambda i: (i, 0)),
            pl.BlockSpec((row_block, LANES), lambda i: (i, 0)),
        ],
        out_specs=pl.BlockSpec((SUBLANES, LANES), lambda i: (0, 0)),
        compiler_params=pltpu.CompilerParams(
            # Output block is a carried accumulator across the grid axis.
            # TODO(synk): on v7x, sharding the row axis across both TensorCores
            # needs CORE_PARALLEL / core_map with per-core partials; a single
            # streaming TC is kept here for portability.
            dimension_semantics=("arbitrary",),
        ),
    )(a2d, b2d)
    # All 8 sublanes hold identical per-lane sums; reduce one row (128 f32).
    return jnp.sum(out[0, :])


@jax.jit
def _between_loss_impl(outputs, targets, gamma):
    pair_sums = []
    inv_n = []
    for a, b in zip(outputs, targets):
        assert a.shape == b.shape
        n = a.size
        af = jnp.ravel(a)  # free reshape; native dtype kept in HBM
        bf = jnp.ravel(b)
        rem = n % LANES
        if rem:
            # TODO(synk): a fully copy-free path for tensors whose numel is not
            # a multiple of 128 needs a raw HBM ref + manual masked-tail DMA;
            # here we pad by < 128 elements (at most one lane row of zeros).
            pad = LANES - rem
            af = jnp.pad(af, (0, pad))
            bf = jnp.pad(bf, (0, pad))
        a2d = af.reshape(-1, LANES)
        b2d = bf.reshape(-1, LANES)
        pair_sums.append(_pair_abs_sum(a2d, b2d))
        inv_n.append(1.0 / float(n))  # L1Loss(reduction='mean') divisor

    pair_means = jnp.stack(pair_sums) * jnp.asarray(inv_n, dtype=jnp.float32)
    return jnp.sum(pair_means * gamma.astype(jnp.float32))


def between_loss(outputs, targets, gamma=(1, 1, 1, 1, 1, 1)):
    """Pallas equivalent of betweenLoss.forward with nn.L1Loss() (mean reduction)."""
    assert len(outputs)
    assert len(outputs) == len(targets)
    g = jnp.asarray(gamma, dtype=jnp.float32)[: len(outputs)]
    return _between_loss_impl(tuple(outputs), tuple(targets), g)


if __name__ == "__main__":
    key = jax.random.PRNGKey(0)
    # Small shapes consistent with intermediate-feature distillation use.
    shapes = [(2, 4, 16, 16), (2, 8, 8, 8), (2, 16, 4, 4), (2, 32)]
    keys = jax.random.split(key, 2 * len(shapes))
    outputs = [jax.random.normal(keys[2 * i], s, dtype=jnp.float32)
               for i, s in enumerate(shapes)]
    targets = [jax.random.normal(keys[2 * i + 1], s, dtype=jnp.float32)
               for i, s in enumerate(shapes)]
    gamma = (1.0, 0.5, 2.0, 0.25)   # non-trivial weights to exercise the scaling

    loss = between_loss(outputs, targets, gamma)
    loss = jax.block_until_ready(loss)

    # Pure-JAX reference (same semantics as PyTorch L1Loss 'mean').
    ref = sum(gamma[i] * jnp.mean(jnp.abs(outputs[i] - targets[i]))
              for i in range(len(outputs)))
    assert jnp.allclose(loss, ref, rtol=1e-5, atol=1e-5), (loss, ref)

    print("KERNEL_OK")
</pallas_src>

<mosaic_0001>
module attributes {stable_mosaic.version = 11 : i64} {
  func.func @kernel(%arg0: i32, %arg1: memref<8x128xf32, #tpu.memory_space<vmem>>, %arg2: memref<8x128xf32, #tpu.memory_space<vmem>>, %arg3: memref<8x128xf32, #tpu.memory_space<vmem>>) attributes {dimension_semantics = [#tpu.dimension_semantics<arbitrary>], iteration_bounds = array<i64: 1>, scalar_prefetch = 0 : i64, scratch_operands = 0 : i64, tpu.core_type = #tpu.core_type<tc>, window_params = [{transform_indices = @transform_0, window_bounds = array<i64: 8, 128>}, {transform_indices = @transform_1, window_bounds = array<i64: 8, 128>}, {pipeline_mode = #tpu.pipeline_mode<synchronous>, transform_indices = @transform_2, window_bounds = array<i64: 8, 128>}]} {
    %c0_i32 = arith.constant 0 : i32
    %0 = arith.cmpi eq, %arg0, %c0_i32 : i32
    %1 = arith.extui %0 : i1 to i32
    %c0_i32_0 = arith.constant 0 : i32
    %2 = arith.cmpi ne, %1, %c0_i32_0 : i32
    scf.if %2 {
      %cst_9 = arith.constant 0.000000e+00 : f32
      %21 = vector.broadcast %cst_9 : f32 to vector<8x128xf32>
      %c0_10 = arith.constant 0 : index
      %c0_11 = arith.constant 0 : index
      %22 = vector.load %arg3[%c0_10, %c0_11] : memref<8x128xf32, #tpu.memory_space<vmem>>, vector<8x128xf32>
      tpu.vector_store %arg3[%c0_10, %c0_11], %21 {strides = array<i32>} : memref<8x128xf32, #tpu.memory_space<vmem>>, vector<8x128xf32>,
    } else {
    }
    %c0 = arith.constant 0 : index
    %c0_1 = arith.constant 0 : index
    %3 = vector.load %arg1[%c0, %c0_1] : memref<8x128xf32, #tpu.memory_space<vmem>>, vector<8x128xf32>
    %c0_2 = arith.constant 0 : index
    %c0_3 = arith.constant 0 : index
    %4 = vector.load %arg2[%c0_2, %c0_3] : memref<8x128xf32, #tpu.memory_space<vmem>>, vector<8x128xf32>
    %5 = arith.subf %3, %4 : vector<8x128xf32>
    %6 = math.absf %5 : vector<8x128xf32>
    %c8_i32 = arith.constant 8 : i32
    %7 = arith.muli %arg0, %c8_i32 : i32
    %8 = tpu.iota {dimensions = array<i32: 0>} : vector<8x128xi32>
    %9 = vector.broadcast %7 : i32 to vector<8x128xi32>
    %10 = arith.addi %9, %8 : vector<8x128xi32>
    %c1_i32 = arith.constant 1 : i32
    %11 = vector.broadcast %c1_i32 : i32 to vector<8x128xi32>
    %12 = arith.cmpi slt, %10, %11 : vector<8x128xi32>
    %cst = arith.constant 0.000000e+00 : f32
    %13 = vector.broadcast %cst : f32 to vector<8x128xf32>
    %14 = arith.select %12, %6, %13 : vector<8x128xi1>, vector<8x128xf32>
    %c0_4 = arith.constant 0 : index
    %c0_5 = arith.constant 0 : index
    %15 = vector.load %arg3[%c0_4, %c0_5] : memref<8x128xf32, #tpu.memory_space<vmem>>, vector<8x128xf32>
    %cst_6 = arith.constant dense<0.000000e+00> : vector<128xf32>
    %16 = vector.multi_reduction <add>, %14, %cst_6 [0] : vector<8x128xf32> to vector<128xf32>
    %17 = vector.shape_cast %16 : vector<128xf32> to vector<1x128xf32>
    %18 = vector.broadcast %17 : vector<1x128xf32> to vector<8x128xf32>
    %19 = arith.addf %15, %18 : vector<8x128xf32>
    %c0_7 = arith.constant 0 : index
    %c0_8 = arith.constant 0 : index
    %20 = vector.load %arg3[%c0_7, %c0_8] : memref<8x128xf32, #tpu.memory_space<vmem>>, vector<8x128xf32>
    tpu.vector_store %arg3[%c0_7, %c0_8], %19 {strides = array<i32>} : memref<8x128xf32, #tpu.memory_space<vmem>>, vector<8x128xf32>,
    return
  }
  func.func @transform_0(%arg0: i32) -> (i32, i32) {
    %c0_i32 = arith.constant 0 : i32
    %c0_i32_0 = arith.constant 0 : i32
    return %arg0, %c0_i32 : i32, i32
  }
  func.func @transform_1(%arg0: i32) -> (i32, i32) {
    %c0_i32 = arith.constant 0 : i32
    %c0_i32_0 = arith.constant 0 : i32
    return %arg0, %c0_i32 : i32, i32
  }
  func.func @transform_2(%arg0: i32) -> (i32, i32) {
    %c0_i32 = arith.constant 0 : i32
    %c0_i32_0 = arith.constant 0 : i32
    %c0_i32_1 = arith.constant 0 : i32
    return %c0_i32, %c0_i32_0 : i32, i32
  }
}

module attributes {stable_mosaic.version = 11 : i64} {
  func.func @kernel(%arg0: i32, %arg1: memref<16x128xf32, #tpu.memory_space<vmem>>, %arg2: memref<16x128xf32, #tpu.memory_space<vmem>>, %arg3: memref<8x128xf32, #tpu.memory_space<vmem>>) attributes {dimension_semantics = [#tpu.dimension_semantics<arbitrary>], iteration_bounds = array<i64: 1>, scalar_prefetch = 0 : i64, scratch_operands = 0 : i64, tpu.core_type = #tpu.core_type<tc>, window_params = [{transform_indices = @transform_0, window_bounds = array<i64: 16, 128>}, {transform_indices = @transform_1, window_bounds = array<i64: 16, 128>}, {pipeline_mode = #tpu.pipeline_mode<synchronous>, transform_indices = @transform_2, window_bounds = array<i64: 8, 128>}]} {
    %c0_i32 = arith.constant 0 : i32
    %0 = arith.cmpi eq, %arg0, %c0_i32 : i32
    %1 = arith.extui %0 : i1 to i32
    %c0_i32_0 = arith.constant 0 : i32
    %2 = arith.cmpi ne, %1, %c0_i32_0 : i32
    scf.if %2 {
      %cst_8 = arith.constant 0.000000e+00 : f32
      %13 = vector.broadcast %cst_8 : f32 to vector<8x128xf32>
      %c0_9 = arith.constant 0 : index
      %c0_10 = arith.constant 0 : index
      %14 = vector.load %arg3[%c0_9, %c0_10] : memref<8x128xf32, #tpu.memory_space<vmem>>, vector<8x128xf32>
      tpu.vector_store %arg3[%c0_9, %c0_10], %13 {strides = array<i32>} : memref<8x128xf32, #tpu.memory_space<vmem>>, vector<8x128xf32>,
    } else {
    }
    %c0 = arith.constant 0 : index
    %c0_1 = arith.constant 0 : index
    %3 = vector.load %arg1[%c0, %c0_1] : memref<16x128xf32, #tpu.memory_space<vmem>>, vector<16x128xf32>
    %c0_2 = arith.constant 0 : index
    %c0_3 = arith.constant 0 : index
    %4 = vector.load %arg2[%c0_2, %c0_3] : memref<16x128xf32, #tpu.memory_space<vmem>>, vector<16x128xf32>
    %5 = arith.subf %3, %4 : vector<16x128xf32>
    %6 = math.absf %5 : vector<16x128xf32>
    %c0_4 = arith.constant 0 : index
    %c0_5 = arith.constant 0 : index
    %7 = vector.load %arg3[%c0_4, %c0_5] : memref<8x128xf32, #tpu.memory_space<vmem>>, vector<8x128xf32>
    %cst = arith.constant dense<0.000000e+00> : vector<128xf32>
    %8 = vector.multi_reduction <add>, %6, %cst [0] : vector<16x128xf32> to vector<128xf32>
    %9 = vector.shape_cast %8 : vector<128xf32> to vector<1x128xf32>
    %10 = vector.broadcast %9 : vector<1x128xf32> to vector<8x128xf32>
    %11 = arith.addf %7, %10 : vector<8x128xf32>
    %c0_6 = arith.constant 0 : index
    %c0_7 = arith.constant 0 : index
    %12 = vector.load %arg3[%c0_6, %c0_7] : memref<8x128xf32, #tpu.memory_space<vmem>>, vector<8x128xf32>
    tpu.vector_store %arg3[%c0_6, %c0_7], %11 {strides = array<i32>} : memref<8x128xf32, #tpu.memory_space<vmem>>, vector<8x128xf32>,
    return
  }
  func.func @transform_0(%arg0: i32) -> (i32, i32) {
    %c0_i32 = arith.constant 0 : i32
    %c0_i32_0 = arith.constant 0 : i32
    return %arg0, %c0_i32 : i32, i32
  }
  func.func @transform_1(%arg0: i32) -> (i32, i32) {
    %c0_i32 = arith.constant 0 : i32
    %c0_i32_0 = arith.constant 0 : i32
    return %arg0, %c0_i32 : i32, i32
  }
  func.func @transform_2(%arg0: i32) -> (i32, i32) {
    %c0_i32 = arith.constant 0 : i32
    %c0_i32_0 = arith.constant 0 : i32
    %c0_i32_1 = arith.constant 0 : i32
    return %c0_i32, %c0_i32_0 : i32, i32
  }
}

module attributes {stable_mosaic.version = 11 : i64} {
  func.func @kernel(%arg0: i32, %arg1: memref<8x128xf32, #tpu.memory_space<vmem>>, %arg2: memref<8x128xf32, #tpu.memory_space<vmem>>, %arg3: memref<8x128xf32, #tpu.memory_space<vmem>>) attributes {dimension_semantics = [#tpu.dimension_semantics<arbitrary>], iteration_bounds = array<i64: 1>, scalar_prefetch = 0 : i64, scratch_operands = 0 : i64, tpu.core_type = #tpu.core_type<tc>, window_params = [{transform_indices = @transform_0, window_bounds = array<i64: 8, 128>}, {transform_indices = @transform_1, window_bounds = array<i64: 8, 128>}, {pipeline_mode = #tpu.pipeline_mode<synchronous>, transform_indices = @transform_2, window_bounds = array<i64: 8, 128>}]} {
    %c0_i32 = arith.constant 0 : i32
    %0 = arith.cmpi eq, %arg0, %c0_i32 : i32
    %1 = arith.extui %0 : i1 to i32
    %c0_i32_0 = arith.constant 0 : i32
    %2 = arith.cmpi ne, %1, %c0_i32_0 : i32
    scf.if %2 {
      %cst_9 = arith.constant 0.000000e+00 : f32
      %21 = vector.broadcast %cst_9 : f32 to vector<8x128xf32>
      %c0_10 = arith.constant 0 : index
      %c0_11 = arith.constant 0 : index
      %22 = vector.load %arg3[%c0_10, %c0_11] : memref<8x128xf32, #tpu.memory_space<vmem>>, vector<8x128xf32>
      tpu.vector_store %arg3[%c0_10, %c0_11], %21 {strides = array<i32>} : memref<8x128xf32, #tpu.memory_space<vmem>>, vector<8x128xf32>,
    } else {
    }
    %c0 = arith.constant 0 : index
    %c0_1 = arith.constant 0 : index
    %3 = vector.load %arg1[%c0, %c0_1] : memref<8x128xf32, #tpu.memory_space<vmem>>, vector<8x128xf32>
    %c0_2 = arith.constant 0 : index
    %c0_3 = arith.constant 0 : index
    %4 = vector.load %arg2[%c0_2, %c0_3] : memref<8x128xf32, #tpu.memory_space<vmem>>, vector<8x128xf32>
    %5 = arith.subf %3, %4 : vector<8x128xf32>
    %6 = math.absf %5 : vector<8x128xf32>
    %c8_i32 = arith.constant 8 : i32
    %7 = arith.muli %arg0, %c8_i32 : i32
    %8 = tpu.iota {dimensions = array<i32: 0>} : vector<8x128xi32>
    %9 = vector.broadcast %7 : i32 to vector<8x128xi32>
    %10 = arith.addi %9, %8 : vector<8x128xi32>
    %c4_i32 = arith.constant 4 : i32
    %11 = vector.broadcast %c4_i32 : i32 to vector<8x128xi32>
    %12 = arith.cmpi slt, %10, %11 : vector<8x128xi32>
    %cst = arith.constant 0.000000e+00 : f32
    %13 = vector.broadcast %cst : f32 to vector<8x128xf32>
    %14 = arith.select %12, %6, %13 : vector<8x128xi1>, vector<8x128xf32>
    %c0_4 = arith.constant 0 : index
    %c0_5 = arith.constant 0 : index
    %15 = vector.load %arg3[%c0_4, %c0_5] : memref<8x128xf32, #tpu.memory_space<vmem>>, vector<8x128xf32>
    %cst_6 = arith.constant dense<0.000000e+00> : vector<128xf32>
    %16 = vector.multi_reduction <add>, %14, %cst_6 [0] : vector<8x128xf32> to vector<128xf32>
    %17 = vector.shape_cast %16 : vector<128xf32> to vector<1x128xf32>
    %18 = vector.broadcast %17 : vector<1x128xf32> to vector<8x128xf32>
    %19 = arith.addf %15, %18 : vector<8x128xf32>
    %c0_7 = arith.constant 0 : index
    %c0_8 = arith.constant 0 : index
    %20 = vector.load %arg3[%c0_7, %c0_8] : memref<8x128xf32, #tpu.memory_space<vmem>>, vector<8x128xf32>
    tpu.vector_store %arg3[%c0_7, %c0_8], %19 {strides = array<i32>} : memref<8x128xf32, #tpu.memory_space<vmem>>, vector<8x128xf32>,
    return
  }
  func.func @transform_0(%arg0: i32) -> (i32, i32) {
    %c0_i32 = arith.constant 0 : i32
    %c0_i32_0 = arith.constant 0 : i32
    return %arg0, %c0_i32 : i32, i32
  }
  func.func @transform_1(%arg0: i32) -> (i32, i32) {
    %c0_i32 = arith.constant 0 : i32
    %c0_i32_0 = arith.constant 0 : i32
    return %arg0, %c0_i32 : i32, i32
  }
  func.func @transform_2(%arg0: i32) -> (i32, i32) {
    %c0_i32 = arith.constant 0 : i32
    %c0_i32_0 = arith.constant 0 : i32
    %c0_i32_1 = arith.constant 0 : i32
    return %c0_i32, %c0_i32_0 : i32, i32
  }
}

module attributes {stable_mosaic.version = 11 : i64} {
  func.func @kernel(%arg0: i32, %arg1: memref<8x128xf32, #tpu.memory_space<vmem>>, %arg2: memref<8x128xf32, #tpu.memory_space<vmem>>, %arg3: memref<8x128xf32, #tpu.memory_space<vmem>>) attributes {dimension_semantics = [#tpu.dimension_semantics<arbitrary>], iteration_bounds = array<i64: 1>, scalar_prefetch = 0 : i64, scratch_operands = 0 : i64, tpu.core_type = #tpu.core_type<tc>, window_params = [{transform_indices = @transform_0, window_bounds = array<i64: 8, 128>}, {transform_indices = @transform_1, window_bounds = array<i64: 8, 128>}, {pipeline_mode = #tpu.pipeline_mode<synchronous>, transform_indices = @transform_2, window_bounds = array<i64: 8, 128>}]} {
    %c0_i32 = arith.constant 0 : i32
    %0 = arith.cmpi eq, %arg0, %c0_i32 : i32
    %1 = arith.extui %0 : i1 to i32
    %c0_i32_0 = arith.constant 0 : i32
    %2 = arith.cmpi ne, %1, %c0_i32_0 : i32
    scf.if %2 {
      %cst_8 = arith.constant 0.000000e+00 : f32
      %13 = vector.broadcast %cst_8 : f32 to vector<8x128xf32>
      %c0_9 = arith.constant 0 : index
      %c0_10 = arith.constant 0 : index
      %14 = vector.load %arg3[%c0_9, %c0_10] : memref<8x128xf32, #tpu.memory_space<vmem>>, vector<8x128xf32>
      tpu.vector_store %arg3[%c0_9, %c0_10], %13 {strides = array<i32>} : memref<8x128xf32, #tpu.memory_space<vmem>>, vector<8x128xf32>,
    } else {
    }
    %c0 = arith.constant 0 : index
    %c0_1 = arith.constant 0 : index
    %3 = vector.load %arg1[%c0, %c0_1] : memref<8x128xf32, #tpu.memory_space<vmem>>, vector<8x128xf32>
    %c0_2 = arith.constant 0 : index
    %c0_3 = arith.constant 0 : index
    %4 = vector.load %arg2[%c0_2, %c0_3] : memref<8x128xf32, #tpu.memory_space<vmem>>, vector<8x128xf32>
    %5 = arith.subf %3, %4 : vector<8x128xf32>
    %6 = math.absf %5 : vector<8x128xf32>
    %c0_4 = arith.constant 0 : index
    %c0_5 = arith.constant 0 : index
    %7 = vector.load %arg3[%c0_4, %c0_5] : memref<8x128xf32, #tpu.memory_space<vmem>>, vector<8x128xf32>
    %cst = arith.constant dense<0.000000e+00> : vector<128xf32>
    %8 = vector.multi_reduction <add>, %6, %cst [0] : vector<8x128xf32> to vector<128xf32>
    %9 = vector.shape_cast %8 : vector<128xf32> to vector<1x128xf32>
    %10 = vector.broadcast %9 : vector<1x128xf32> to vector<8x128xf32>
    %11 = arith.addf %7, %10 : vector<8x128xf32>
    %c0_6 = arith.constant 0 : index
    %c0_7 = arith.constant 0 : index
    %12 = vector.load %arg3[%c0_6, %c0_7] : memref<8x128xf32, #tpu.memory_space<vmem>>, vector<8x128xf32>
    tpu.vector_store %arg3[%c0_6, %c0_7], %11 {strides = array<i32>} : memref<8x128xf32, #tpu.memory_space<vmem>>, vector<8x128xf32>,
    return
  }
  func.func @transform_0(%arg0: i32) -> (i32, i32) {
    %c0_i32 = arith.constant 0 : i32
    %c0_i32_0 = arith.constant 0 : i32
    return %arg0, %c0_i32 : i32, i32
  }
  func.func @transform_1(%arg0: i32) -> (i32, i32) {
    %c0_i32 = arith.constant 0 : i32
    %c0_i32_0 = arith.constant 0 : i32
    return %arg0, %c0_i32 : i32, i32
  }
  func.func @transform_2(%arg0: i32) -> (i32, i32) {
    %c0_i32 = arith.constant 0 : i32
    %c0_i32_0 = arith.constant 0 : i32
    %c0_i32_1 = arith.constant 0 : i32
    return %c0_i32, %c0_i32_0 : i32, i32
  }
}

</mosaic_0001>

<llo_original>
// kernel: _between_loss_impl.7
$region0: #{_between_loss_impl.7}
  #allocation0 [shape = 'u32[]', space=smem, size = 0x4, offset = 0x4, fixed_abs, tag = 'smem constant byte address 0x4 - core index']
  #allocation1 [shape = 'u32[144,128]{1,0:T(1,128)}', space=vmem, size = 0x12000, scoped, tag = 'internal scratch']
  %s0 = inlined_call_operand.vmem [shape: f32[1,128], index: 0, kind: input, shape index: {}]
  %s1 = inlined_call_operand.vmem [shape: f32[1,128], index: 1, kind: input, shape index: {}]
  %s2 = inlined_call_operand.vmem [shape: f32[8,128], index: 2, kind: output, shape index: {}]
  %s3 = sld [smem:[#allocation0]]
  $region22: #{_between_loss_impl.7} parent=0
    _
  %s5 = ssub.s32 1, %s3
  %s6 = scalar_select 0, %s5, %s3
  // Predicated region
  $region2: #{_between_loss_impl.7} parent=0 // pred_check
    _
  $region3: #{_between_loss_impl.7} parent=0 // pred_check_branch
    %8 = sbr.rel (0) target = $region5
  $region4: #{_between_loss_impl.7} parent=0 // pred_region
    _
  $region5: #{_between_loss_impl.7} parent=0 // pred_fallthru
    _
  // Predicated region
  $region6: #{_between_loss_impl.7} parent=0 // pred_check
    _
  $region7: #{_between_loss_impl.7} parent=0 // pred_check_branch
    %10 = sbr.rel (0) target = $region9
  $region8: #{_between_loss_impl.7} parent=0 // pred_region
    _
  $region9: #{_between_loss_impl.7} parent=0 // pred_fallthru
    _
  %p11 = scmp.eq.s32.totalorder 0, 0
  // Predicated region
  $region10: #{_between_loss_impl.7} parent=0 // pred_check
    %p12 = pneg %p11
  $region11: #{_between_loss_impl.7} parent=0 // pred_check_branch
    %14 = sbr.rel (%p12) target = $region13
  $region12: #{_between_loss_impl.7} parent=0 // pred_region
    %15 = vst [vmem:[%s2] sm:$0xff] 0.0
  $region13: #{_between_loss_impl.7} parent=0 // pred_fallthru
    _
  %v16 = vld [vmem:[%s0] sm:$0xff]
  %v17 = vld [vmem:[%s1] sm:$0xff]
  %v18 = vsub.f32 %v16, %v17
  %v19 = vand.u32 2147483647, %v18
  %s20 = smul.u32 0, 8
  %v21 = vlaneseq
  %v22 = vshrl.u32 %v21, 7
  %v23 = vstv %s20
  %v24 = vadd.s32 %v23, %v22
  %vm25 = vcmp.lt.s32.totalorder %v24, 1
  %v26 = vsel %vm25, %v19, 0.0
  %v27 = vld [vmem:[%s2] sm:$0xff]
  %v28 = vrot.slane %v26, 4
  %v29 = vadd.f32 %v26, %v28
  %v30 = vrot.slane %v29, 2
  %v31 = vadd.f32 %v29, %v30
  %v32 = vrot.slane %v31, 1
  %v33 = vadd.f32 %v31, %v32
  %v34 = vadd.f32 %v27, %v33
  %35 = vst [vmem:[%s2] sm:$0xff] %v34
  // Predicated region
  $region14: #{_between_loss_impl.7} parent=0 // pred_check
    _
  $region15: #{_between_loss_impl.7} parent=0 // pred_check_branch
    %37 = sbr.rel (0) target = $region17
  $region16: #{_between_loss_impl.7} parent=0 // pred_region
    _
  $region17: #{_between_loss_impl.7} parent=0 // pred_fallthru
    _
  // Predicated region
  $region18: #{_between_loss_impl.7} parent=0 // pred_check
    _
  $region19: #{_between_loss_impl.7} parent=0 // pred_check_branch
    %39 = sbr.rel (0) target = $region21
  $region20: #{_between_loss_impl.7} parent=0 // pred_region
    _
  $region21: #{_between_loss_impl.7} parent=0 // pred_fallthru
    _

// kernel: _between_loss_impl.4
$region0: #{_between_loss_impl.4}
  #allocation0 [shape = 'u32[]', space=smem, size = 0x4, offset = 0x4, fixed_abs, tag = 'smem constant byte address 0x4 - core index']
  #allocation1 [shape = 'u32[144,128]{1,0:T(1,128)}', space=vmem, size = 0x12000, scoped, tag = 'internal scratch']
  %s0 = inlined_call_operand.vmem [shape: f32[16,128], index: 0, kind: input, shape index: {}]
  %s1 = inlined_call_operand.vmem [shape: f32[16,128], index: 1, kind: input, shape index: {}]
  %s2 = inlined_call_operand.vmem [shape: f32[8,128], index: 2, kind: output, shape index: {}]
  %s3 = sld [smem:[#allocation0]]
  $region22: #{_between_loss_impl.4} parent=0
    _
  %s5 = ssub.s32 1, %s3
  %s6 = scalar_select 0, %s5, %s3
  // Predicated region
  $region2: #{_between_loss_impl.4} parent=0 // pred_check
    _
  $region3: #{_between_loss_impl.4} parent=0 // pred_check_branch
    %8 = sbr.rel (0) target = $region5
  $region4: #{_between_loss_impl.4} parent=0 // pred_region
    _
  $region5: #{_between_loss_impl.4} parent=0 // pred_fallthru
    _
  // Predicated region
  $region6: #{_between_loss_impl.4} parent=0 // pred_check
    _
  $region7: #{_between_loss_impl.4} parent=0 // pred_check_branch
    %10 = sbr.rel (0) target = $region9
  $region8: #{_between_loss_impl.4} parent=0 // pred_region
    _
  $region9: #{_between_loss_impl.4} parent=0 // pred_fallthru
    _
  %p11 = scmp.eq.s32.totalorder 0, 0
  // Predicated region
  $region10: #{_between_loss_impl.4} parent=0 // pred_check
    %p12 = pneg %p11
  $region11: #{_between_loss_impl.4} parent=0 // pred_check_branch
    %14 = sbr.rel (%p12) target = $region13
  $region12: #{_between_loss_impl.4} parent=0 // pred_region
    %15 = vst [vmem:[%s2] sm:$0xff] 0.0
  $region13: #{_between_loss_impl.4} parent=0 // pred_fallthru
    _
  %v16 = vld [vmem:[%s0] sm:$0xff]
  %v17 = vld [vmem:[%s0 + $0x8] sm:$0xff]
  %v18 = vld [vmem:[%s1] sm:$0xff]
  %v19 = vld [vmem:[%s1 + $0x8] sm:$0xff]
  %v20 = vsub.f32 %v16, %v18
  %v21 = vsub.f32 %v17, %v19
  %v22 = vand.u32 2147483647, %v20
  %v23 = vand.u32 2147483647, %v21
  %v24 = vld [vmem:[%s2] sm:$0xff]
  %v25 = vadd.f32 %v22, %v23
  %v26 = vrot.slane %v25, 4
  %v27 = vadd.f32 %v25, %v26
  %v28 = vrot.slane %v27, 2
  %v29 = vadd.f32 %v27, %v28
  %v30 = vrot.slane %v29, 1
  %v31 = vadd.f32 %v29, %v30
  %v32 = vadd.f32 %v24, %v31
  %33 = vst [vmem:[%s2] sm:$0xff] %v32
  // Predicated region
  $region14: #{_between_loss_impl.4} parent=0 // pred_check
    _
  $region15: #{_between_loss_impl.4} parent=0 // pred_check_branch
    %35 = sbr.rel (0) target = $region17
  $region16: #{_between_loss_impl.4} parent=0 // pred_region
    _
  $region17: #{_between_loss_impl.4} parent=0 // pred_fallthru
    _
  // Predicated region
  $region18: #{_between_loss_impl.4} parent=0 // pred_check
    _
  $region19: #{_between_loss_impl.4} parent=0 // pred_check_branch
    %37 = sbr.rel (0) target = $region21
  $region20: #{_between_loss_impl.4} parent=0 // pred_region
    _
  $region21: #{_between_loss_impl.4} parent=0 // pred_fallthru
    _

// kernel: _between_loss_impl.6
$region0: #{_between_loss_impl.6}
  #allocation0 [shape = 'u32[]', space=smem, size = 0x4, offset = 0x4, fixed_abs, tag = 'smem constant byte address 0x4 - core index']
  #allocation1 [shape = 'u32[144,128]{1,0:T(1,128)}', space=vmem, size = 0x12000, scoped, tag = 'internal scratch']
  %s0 = inlined_call_operand.vmem [shape: f32[4,128], index: 0, kind: input, shape index: {}]
  %s1 = inlined_call_operand.vmem [shape: f32[4,128], index: 1, kind: input, shape index: {}]
  %s2 = inlined_call_operand.vmem [shape: f32[8,128], index: 2, kind: output, shape index: {}]
  %s3 = sld [smem:[#allocation0]]
  $region22: #{_between_loss_impl.6} parent=0
    _
  %s5 = ssub.s32 1, %s3
  %s6 = scalar_select 0, %s5, %s3
  // Predicated region
  $region2: #{_between_loss_impl.6} parent=0 // pred_check
    _
  $region3: #{_between_loss_impl.6} parent=0 // pred_check_branch
    %8 = sbr.rel (0) target = $region5
  $region4: #{_between_loss_impl.6} parent=0 // pred_region
    _
  $region5: #{_between_loss_impl.6} parent=0 // pred_fallthru
    _
  // Predicated region
  $region6: #{_between_loss_impl.6} parent=0 // pred_check
    _
  $region7: #{_between_loss_impl.6} parent=0 // pred_check_branch
    %10 = sbr.rel (0) target = $region9
  $region8: #{_between_loss_impl.6} parent=0 // pred_region
    _
  $region9: #{_between_loss_impl.6} parent=0 // pred_fallthru
    _
  %p11 = scmp.eq.s32.totalorder 0, 0
  // Predicated region
  $region10: #{_between_loss_impl.6} parent=0 // pred_check
    %p12 = pneg %p11
  $region11: #{_between_loss_impl.6} parent=0 // pred_check_branch
    %14 = sbr.rel (%p12) target = $region13
  $region12: #{_between_loss_impl.6} parent=0 // pred_region
    %15 = vst [vmem:[%s2] sm:$0xff] 0.0
  $region13: #{_between_loss_impl.6} parent=0 // pred_fallthru
    _
  %v16 = vld [vmem:[%s0] sm:$0xff]
  %v17 = vld [vmem:[%s1] sm:$0xff]
  %v18 = vsub.f32 %v16, %v17
  %v19 = vand.u32 2147483647, %v18
  %s20 = smul.u32 0, 8
  %v21 = vlaneseq
  %v22 = vshrl.u32 %v21, 7
  %v23 = vstv %s20
  %v24 = vadd.s32 %v23, %v22
  %vm25 = vcmp.lt.s32.totalorder %v24, 4
  %v26 = vsel %vm25, %v19, 0.0
  %v27 = vld [vmem:[%s2] sm:$0xff]
  %v28 = vrot.slane %v26, 4
  %v29 = vadd.f32 %v26, %v28
  %v30 = vrot.slane %v29, 2
  %v31 = vadd.f32 %v29, %v30
  %v32 = vrot.slane %v31, 1
  %v33 = vadd.f32 %v31, %v32
  %v34 = vadd.f32 %v27, %v33
  %35 = vst [vmem:[%s2] sm:$0xff] %v34
  // Predicated region
  $region14: #{_between_loss_impl.6} parent=0 // pred_check
    _
  $region15: #{_between_loss_impl.6} parent=0 // pred_check_branch
    %37 = sbr.rel (0) target = $region17
  $region16: #{_between_loss_impl.6} parent=0 // pred_region
    _
  $region17: #{_between_loss_impl.6} parent=0 // pred_fallthru
    _
  // Predicated region
  $region18: #{_between_loss_impl.6} parent=0 // pred_check
    _
  $region19: #{_between_loss_impl.6} parent=0 // pred_check_branch
    %39 = sbr.rel (0) target = $region21
  $region20: #{_between_loss_impl.6} parent=0 // pred_region
    _
  $region21: #{_between_loss_impl.6} parent=0 // pred_fallthru
    _

// kernel: _between_loss_impl.5
$region0: #{_between_loss_impl.5}
  #allocation0 [shape = 'u32[]', space=smem, size = 0x4, offset = 0x4, fixed_abs, tag = 'smem constant byte address 0x4 - core index']
  #allocation1 [shape = 'u32[144,128]{1,0:T(1,128)}', space=vmem, size = 0x12000, scoped, tag = 'internal scratch']
  %s0 = inlined_call_operand.vmem [shape: f32[8,128], index: 0, kind: input, shape index: {}]
  %s1 = inlined_call_operand.vmem [shape: f32[8,128], index: 1, kind: input, shape index: {}]
  %s2 = inlined_call_operand.vmem [shape: f32[8,128], index: 2, kind: output, shape index: {}]
  %s3 = sld [smem:[#allocation0]]
  $region22: #{_between_loss_impl.5} parent=0
    _
  %s5 = ssub.s32 1, %s3
  %s6 = scalar_select 0, %s5, %s3
  // Predicated region
  $region2: #{_between_loss_impl.5} parent=0 // pred_check
    _
  $region3: #{_between_loss_impl.5} parent=0 // pred_check_branch
    %8 = sbr.rel (0) target = $region5
  $region4: #{_between_loss_impl.5} parent=0 // pred_region
    _
  $region5: #{_between_loss_impl.5} parent=0 // pred_fallthru
    _
  // Predicated region
  $region6: #{_between_loss_impl.5} parent=0 // pred_check
    _
  $region7: #{_between_loss_impl.5} parent=0 // pred_check_branch
    %10 = sbr.rel (0) target = $region9
  $region8: #{_between_loss_impl.5} parent=0 // pred_region
    _
  $region9: #{_between_loss_impl.5} parent=0 // pred_fallthru
    _
  %p11 = scmp.eq.s32.totalorder 0, 0
  // Predicated region
  $region10: #{_between_loss_impl.5} parent=0 // pred_check
    %p12 = pneg %p11
  $region11: #{_between_loss_impl.5} parent=0 // pred_check_branch
    %14 = sbr.rel (%p12) target = $region13
  $region12: #{_between_loss_impl.5} parent=0 // pred_region
    %15 = vst [vmem:[%s2] sm:$0xff] 0.0
  $region13: #{_between_loss_impl.5} parent=0 // pred_fallthru
    _
  %v16 = vld [vmem:[%s0] sm:$0xff]
  %v17 = vld [vmem:[%s1] sm:$0xff]
  %v18 = vsub.f32 %v16, %v17
  %v19 = vand.u32 2147483647, %v18
  %v20 = vld [vmem:[%s2] sm:$0xff]
  %v21 = vrot.slane %v19, 4
  %v22 = vadd.f32 %v19, %v21
  %v23 = vrot.slane %v22, 2
  %v24 = vadd.f32 %v22, %v23
  %v25 = vrot.slane %v24, 1
  %v26 = vadd.f32 %v24, %v25
  %v27 = vadd.f32 %v20, %v26
  %28 = vst [vmem:[%s2] sm:$0xff] %v27
  // Predicated region
  $region14: #{_between_loss_impl.5} parent=0 // pred_check
    _
  $region15: #{_between_loss_impl.5} parent=0 // pred_check_branch
    %30 = sbr.rel (0) target = $region17
  $region16: #{_between_loss_impl.5} parent=0 // pred_region
    _
  $region17: #{_between_loss_impl.5} parent=0 // pred_fallthru
    _
  // Predicated region
  $region18: #{_between_loss_impl.5} parent=0 // pred_check
    _
  $region19: #{_between_loss_impl.5} parent=0 // pred_check_branch
    %32 = sbr.rel (0) target = $region21
  $region20: #{_between_loss_impl.5} parent=0 // pred_region
    _
  $region21: #{_between_loss_impl.5} parent=0 // pred_fallthru
    _

</llo_original>
